<compile_context>
chip_gen: v5e
topology: v5e:2x2
jax: 0.10.0
libtpu: 0.0.40
codegen_flags: <defaults>
</compile_context>

<pallas_src>
import functools

import jax
import jax.numpy as jnp
from jax.experimental import pallas as pl
from jax.experimental.pallas import tpu as pltpu

MAX_FLOW = 0.02  # mmcv.quantize_flow default max_val


# --------------------------------------------------------------------------
# Fused kernel: flow surrogate -> quantize -> embed -> pool -> heads
# --------------------------------------------------------------------------
def _fused_apn_kernel(imgs_ref, w_flow_ref, w_b_ref, b_b_ref, w_head_ref,
                      b_head_ref, out_ref, *, num_classes):
    # imgs_ref:  (TB, C, T, P) bf16 cropped clip block, spatial dims lane-dense
    # w_flow_ref:(2, C) f32 in SMEM (already folds quantize_flow's 1/W, 1/H)
    # w_b_ref:   (2*P, hidden) f32  [dx-weights ; dy-weights], /127.5 folded in
    # b_b_ref:   (1, hidden) f32    (includes the -sum(w_b) affine term)
    # w_head_ref:(hidden, nc+ns) f32   b_head_ref:(1, nc+ns) f32
    # out_ref:   (1, TB, nc+ns) f32 -> [softmax(cls) | sigmoid(reg)]
    TB, C, T, P = imgs_ref.shape
    Tm1 = T - 1

    # Upcast right after the (halved) bf16 HBM load; all in-kernel math is f32
    # so the same kernel is valid on v5e (no bf16 VPU/EUP) and v6e/v7x.
    x = imgs_ref[...].astype(jnp.float32)                 # (TB, C, T, P)

    # Consecutive-frame differences (T lives in sublanes).
    # TODO(synk): if a Mosaic dump shows a relayout here, switch to
    # x - pltpu.roll(x, 1, axis=2) and mask frame 0 after the ReLU instead.
    d = x[:, :, 1:, :] - x[:, :, :-1, :]                  # (TB, C, Tm1, P)

    # Pointwise flow surrogate: unrolled scalar FMAs from SMEM, vectorized
    # over the whole clip block (no degenerate 2-row MXU pass).
    fu = w_flow_ref[0, 0] * d[:, 0]                       # (TB, Tm1, P)
    fv = w_flow_ref[1, 0] * d[:, 0]
    for c in range(1, C):
        dc = d[:, c]
        fu = fu + w_flow_ref[0, c] * dc
        fv = fv + w_flow_ref[1, c] * dc

    def quantize(f):
        # mmcv quantize_flow-style binning; the (q - 127.5)/127.5 normalization
        # is folded into (w_b, b_b) at parameter-setup time.
        clipped = jnp.clip(f, -MAX_FLOW, MAX_FLOW) + MAX_FLOW
        return jnp.minimum(jnp.floor(clipped * (255.0 / (2.0 * MAX_FLOW))), 254.0)

    # Fold TB into the matmul M dimension: one fat backbone MXU pass per step.
    qu2 = quantize(fu).reshape(TB * Tm1, P)
    qv2 = quantize(fv).reshape(TB * Tm1, P)
    q2 = jnp.concatenate([qu2, qv2], axis=-1)             # (TB*Tm1, 2P)

    h = jnp.dot(q2, w_b_ref[...], preferred_element_type=jnp.float32)
    h = jnp.maximum(h + b_b_ref[...], 0.0)                # (TB*Tm1, hidden)

    # Temporal mean pooling per clip.
    feat = jnp.sum(h.reshape(TB, Tm1, -1), axis=1) * (1.0 / Tm1)   # (TB, hidden)

    # Fused cls|reg head: one MXU pass over concatenated weights, then a
    # vectorized masked softmax over the cls columns / sigmoid over the rest.
    logits = jnp.dot(feat, w_head_ref[...], preferred_element_type=jnp.float32)
    logits = logits + b_head_ref[...]                      # (TB, nc+ns)

    col = jax.lax.broadcasted_iota(jnp.int32, logits.shape, 1)
    is_cls = col < num_classes
    m = jnp.max(jnp.where(is_cls, logits, -1e30), axis=-1, keepdims=True)
    e = jnp.where(is_cls, jnp.exp(logits - m), 0.0)
    probs = e * pl.reciprocal(jnp.sum(e, axis=-1, keepdims=True), approx=False)
    sig = pl.reciprocal(1.0 + jnp.exp(-logits), approx=False)

    # Single merged store: [softmax(cls) | sigmoid(reg)].
    out_ref[0] = jnp.where(is_cls, probs, sig)


# --------------------------------------------------------------------------
# Wrapper (mirrors APN_fly.forward_test)
# --------------------------------------------------------------------------
def apn_fly_forward_test(imgs, params, crop, num_classes):
    """imgs: (B, num_segs, C, T, H, W) float32."""
    B, num_segs = imgs.shape[:2]
    imgs = imgs.reshape((-1,) + imgs.shape[2:])            # (Bp, C, T, H, W)
    Bp, C, T, H, W = imgs.shape
    P = crop * crop
    y0 = (H - crop) // 2
    x0 = (W - crop) // 2

    # CenterCrop pushed onto the input (the pointwise flow surrogate commutes
    # with the crop); bf16 cast halves the only large HBM stream the kernel reads.
    x = imgs[:, :, :, y0:y0 + crop, x0:x0 + crop].reshape(Bp, C, T, P)
    x = x.astype(jnp.bfloat16)

    hidden = params["w_b"].shape[1]
    nh = params["w_head"].shape[1]
    ns = nh - num_classes

    # Clips per grid step: fat blocks amortize per-step overhead and give the
    # MXU a real M = TB*(T-1) dimension, but keep >= 2 grid steps so the
    # "parallel" axis can shard across v7x's two TensorCores.  No divisor
    # requirement: pad the batch to a multiple of TB and slice the tail off.
    TB_CAP = 256                                           # ~1.5 MiB bf16 / block
    TB = 1 if Bp <= 1 else min(TB_CAP, pl.cdiv(Bp, 2))
    num_blocks = pl.cdiv(Bp, TB)
    Bp_pad = num_blocks * TB
    if Bp_pad != Bp:
        x = jnp.pad(x, ((0, Bp_pad - Bp), (0, 0), (0, 0), (0, 0)))

    kernel = functools.partial(_fused_apn_kernel, num_classes=num_classes)

    out = pl.pallas_call(
        kernel,
        out_shape=jax.ShapeDtypeStruct((num_blocks, TB, nh), jnp.float32),
        grid=(num_blocks,),
        in_specs=[
            pl.BlockSpec((TB, C, T, P), lambda i: (i, 0, 0, 0)),
            pl.BlockSpec(memory_space=pltpu.MemorySpace.SMEM),   # w_flow scalars
            pl.BlockSpec((2 * P, hidden), lambda i: (0, 0)),
            pl.BlockSpec((1, hidden), lambda i: (0, 0)),
            pl.BlockSpec((hidden, nh), lambda i: (0, 0)),
            pl.BlockSpec((1, nh), lambda i: (0, 0)),
        ],
        out_specs=pl.BlockSpec((1, TB, nh), lambda i: (i, 0, 0)),
        compiler_params=pltpu.CompilerParams(
            dimension_semantics=("parallel",),
            vmem_limit_bytes=48 * 1024 * 1024,   # < v7x's 64 MiB physical VMEM
        ),
    )(x, params["w_flow"], params["w_b"], params["b_b"],
      params["w_head"], params["b_head"])

    out = out.reshape(Bp_pad, nh)[:Bp]
    cls_score = out[:, :num_classes]
    reg_score = out[:, num_classes:]

    # Segment averaging (identity when num_segs == 1, matching torch).
    cls_score = cls_score.reshape(B, num_segs, -1).mean(axis=1)
    reg_score = reg_score.reshape(B, num_segs, -1).mean(axis=1)

    # TODO(synk): decode_progression formula not in snippet; use sum of stages.
    progression = jnp.sum(reg_score, axis=-1)
    return cls_score, progression


def init_params(key, C, crop, H, W, hidden=32, num_classes=5, num_stages=10):
    D_in = 2 * crop * crop
    ks = jax.random.split(key, 5)
    # Fold mmcv quantize_flow's 1/W (dx) and 1/H (dy) normalization into the
    # flow-surrogate weights, and the post-quantization (q - 127.5)/127.5
    # affine into (w_b, b_b): exact in f32, zero per-call cost.
    w_flow = jax.random.normal(ks[0], (2, C), jnp.float32) * 0.05
    w_flow = w_flow * jnp.array([[1.0 / W], [1.0 / H]], jnp.float32)
    w_b_raw = jax.random.normal(ks[1], (D_in, hidden), jnp.float32) * 0.02
    b_b_raw = jax.random.normal(ks[2], (1, hidden), jnp.float32) * 0.01
    w_b = w_b_raw * (1.0 / 127.5)
    b_b = b_b_raw - jnp.sum(w_b_raw, axis=0, keepdims=True)
    w_cls = jax.random.normal(ks[3], (hidden, num_classes), jnp.float32) * 0.1
    w_reg = jax.random.normal(ks[4], (hidden, num_stages), jnp.float32) * 0.1
    return {
        "w_flow": w_flow,
        "w_b": w_b,
        "b_b": b_b,
        # cls | reg head weights concatenated -> single MXU pass in-kernel.
        "w_head": jnp.concatenate([w_cls, w_reg], axis=1),
        "b_head": jnp.zeros((1, num_classes + num_stages), jnp.float32),
    }


if __name__ == "__main__":
    key = jax.random.PRNGKey(0)
    k_img, k_par = jax.random.split(key)

    B, num_segs, C, T, H, W = 2, 1, 3, 4, 32, 32
    crop = 16
    num_classes = 5
    num_stages = 10

    imgs = jax.random.uniform(k_img, (B, num_segs, C, T, H, W),
                              jnp.float32, 0.0, 255.0)
    params = init_params(k_par, C=C, crop=crop, H=H, W=W,
                         hidden=32, num_classes=num_classes,
                         num_stages=num_stages)

    fwd = jax.jit(functools.partial(apn_fly_forward_test,
                                    crop=crop, num_classes=num_classes))
    cls_score, progression = fwd(imgs, params)
    jax.block_until_ready((cls_score, progression))

    assert cls_score.shape == (B, num_classes)
    assert progression.shape == (B,)
    assert bool(jnp.all(jnp.isfinite(cls_score)))
    assert bool(jnp.all(jnp.isfinite(progression)))
    print("KERNEL_OK")
</pallas_src>

<mosaic_0001>
module attributes {stable_mosaic.version = 11 : i64} {
  func.func @_fused_apn_kernel(%arg0: i32, %arg1: memref<1x3x4x256xbf16, #tpu.memory_space<vmem>>, %arg2: memref<2x3xf32, #tpu.memory_space<smem>>, %arg3: memref<512x32xf32, #tpu.memory_space<vmem>>, %arg4: memref<1x32xf32, #tpu.memory_space<vmem>>, %arg5: memref<32x15xf32, #tpu.memory_space<vmem>>, %arg6: memref<1x15xf32, #tpu.memory_space<vmem>>, %arg7: memref<1x1x15xf32, #tpu.memory_space<vmem>>) attributes {dimension_semantics = [#tpu.dimension_semantics<parallel>], iteration_bounds = array<i64: 2>, scalar_prefetch = 0 : i64, scratch_operands = 0 : i64, tpu.core_type = #tpu.core_type<tc>, window_params = [{transform_indices = @transform_0, window_bounds = array<i64: 1, 3, 4, 256>}, {transform_indices = @transform_1, window_bounds = array<i64: 2, 3>}, {pipeline_mode = #tpu.pipeline_mode<synchronous>, transform_indices = @transform_2, window_bounds = array<i64: 512, 32>}, {pipeline_mode = #tpu.pipeline_mode<synchronous>, transform_indices = @transform_3, window_bounds = array<i64: 1, 32>}, {pipeline_mode = #tpu.pipeline_mode<synchronous>, transform_indices = @transform_4, window_bounds = array<i64: 32, 15>}, {pipeline_mode = #tpu.pipeline_mode<synchronous>, transform_indices = @transform_5, window_bounds = array<i64: 1, 15>}, {transform_indices = @transform_6, window_bounds = array<i64: 1, 1, 15>}]} {
    %c0 = arith.constant 0 : index
    %c0_0 = arith.constant 0 : index
    %c0_1 = arith.constant 0 : index
    %c0_2 = arith.constant 0 : index
    %0 = vector.load %arg1[%c0, %c0_0, %c0_1, %c0_2] : memref<1x3x4x256xbf16, #tpu.memory_space<vmem>>, vector<1x3x4x256xbf16>
    %1 = arith.extf %0 : vector<1x3x4x256xbf16> to vector<1x3x4x256xf32>
    %2 = vector.extract_strided_slice %1 {offsets = [0, 0, 1, 0], sizes = [1, 3, 3, 256], strides = [1, 1, 1, 1]} : vector<1x3x4x256xf32> to vector<1x3x3x256xf32>
    %3 = vector.extract_strided_slice %1 {offsets = [0, 0, 0, 0], sizes = [1, 3, 3, 256], strides = [1, 1, 1, 1]} : vector<1x3x4x256xf32> to vector<1x3x3x256xf32>
    %4 = arith.subf %2, %3 : vector<1x3x3x256xf32>
    %c0_3 = arith.constant 0 : index
    %c0_4 = arith.constant 0 : index
    %5 = memref.load %arg2[%c0_3, %c0_4] : memref<2x3xf32, #tpu.memory_space<smem>>
    %6 = vector.extract_strided_slice %4 {offsets = [0, 0, 0, 0], sizes = [1, 1, 3, 256], strides = [1, 1, 1, 1]} : vector<1x3x3x256xf32> to vector<1x1x3x256xf32>
    %7 = vector.shape_cast %6 : vector<1x1x3x256xf32> to vector<1x3x256xf32>
    %8 = vector.broadcast %5 : f32 to vector<1x3x256xf32>
    %9 = arith.mulf %8, %7 : vector<1x3x256xf32>
    %c1 = arith.constant 1 : index
    %c0_5 = arith.constant 0 : index
    %10 = memref.load %arg2[%c1, %c0_5] : memref<2x3xf32, #tpu.memory_space<smem>>
    %11 = vector.extract_strided_slice %4 {offsets = [0, 0, 0, 0], sizes = [1, 1, 3, 256], strides = [1, 1, 1, 1]} : vector<1x3x3x256xf32> to vector<1x1x3x256xf32>
    %12 = vector.shape_cast %11 : vector<1x1x3x256xf32> to vector<1x3x256xf32>
    %13 = vector.broadcast %10 : f32 to vector<1x3x256xf32>
    %14 = arith.mulf %13, %12 : vector<1x3x256xf32>
    %15 = vector.extract_strided_slice %4 {offsets = [0, 1, 0, 0], sizes = [1, 1, 3, 256], strides = [1, 1, 1, 1]} : vector<1x3x3x256xf32> to vector<1x1x3x256xf32>
    %16 = vector.shape_cast %15 : vector<1x1x3x256xf32> to vector<1x3x256xf32>
    %c0_6 = arith.constant 0 : index
    %c1_7 = arith.constant 1 : index
    %17 = memref.load %arg2[%c0_6, %c1_7] : memref<2x3xf32, #tpu.memory_space<smem>>
    %18 = vector.broadcast %17 : f32 to vector<1x3x256xf32>
    %19 = arith.mulf %18, %16 : vector<1x3x256xf32>
    %20 = arith.addf %9, %19 : vector<1x3x256xf32>
    %c1_8 = arith.constant 1 : index
    %c1_9 = arith.constant 1 : index
    %21 = memref.load %arg2[%c1_8, %c1_9] : memref<2x3xf32, #tpu.memory_space<smem>>
    %22 = vector.broadcast %21 : f32 to vector<1x3x256xf32>
    %23 = arith.mulf %22, %16 : vector<1x3x256xf32>
    %24 = arith.addf %14, %23 : vector<1x3x256xf32>
    %25 = vector.extract_strided_slice %4 {offsets = [0, 2, 0, 0], sizes = [1, 1, 3, 256], strides = [1, 1, 1, 1]} : vector<1x3x3x256xf32> to vector<1x1x3x256xf32>
    %26 = vector.shape_cast %25 : vector<1x1x3x256xf32> to vector<1x3x256xf32>
    %c0_10 = arith.constant 0 : index
    %c2 = arith.constant 2 : index
    %27 = memref.load %arg2[%c0_10, %c2] : memref<2x3xf32, #tpu.memory_space<smem>>
    %28 = vector.broadcast %27 : f32 to vector<1x3x256xf32>
    %29 = arith.mulf %28, %26 : vector<1x3x256xf32>
    %30 = arith.addf %20, %29 : vector<1x3x256xf32>
    %c1_11 = arith.constant 1 : index
    %c2_12 = arith.constant 2 : index
    %31 = memref.load %arg2[%c1_11, %c2_12] : memref<2x3xf32, #tpu.memory_space<smem>>
    %32 = vector.broadcast %31 : f32 to vector<1x3x256xf32>
    %33 = arith.mulf %32, %26 : vector<1x3x256xf32>
    %34 = arith.addf %24, %33 : vector<1x3x256xf32>
    %cst = arith.constant -2.000000e-02 : f32
    %cst_13 = arith.constant 2.000000e-02 : f32
    %35 = vector.broadcast %cst : f32 to vector<1x3x256xf32>
    %36 = arith.maximumf %35, %30 : vector<1x3x256xf32>
    %37 = vector.broadcast %cst_13 : f32 to vector<1x3x256xf32>
    %38 = arith.minimumf %37, %36 : vector<1x3x256xf32>
    %cst_14 = arith.constant 2.000000e-02 : f32
    %39 = vector.broadcast %cst_14 : f32 to vector<1x3x256xf32>
    %40 = arith.addf %38, %39 : vector<1x3x256xf32>
    %cst_15 = arith.constant 6.375000e+03 : f32
    %41 = vector.broadcast %cst_15 : f32 to vector<1x3x256xf32>
    %42 = arith.mulf %40, %41 : vector<1x3x256xf32>
    %43 = math.floor %42 : vector<1x3x256xf32>
    %cst_16 = arith.constant 2.540000e+02 : f32
    %44 = vector.broadcast %cst_16 : f32 to vector<1x3x256xf32>
    %45 = arith.minimumf %43, %44 : vector<1x3x256xf32>
    %46 = vector.shape_cast %45 : vector<1x3x256xf32> to vector<3x256xf32>
    %cst_17 = arith.constant -2.000000e-02 : f32
    %cst_18 = arith.constant 2.000000e-02 : f32
    %47 = vector.broadcast %cst_17 : f32 to vector<1x3x256xf32>
    %48 = arith.maximumf %47, %34 : vector<1x3x256xf32>
    %49 = vector.broadcast %cst_18 : f32 to vector<1x3x256xf32>
    %50 = arith.minimumf %49, %48 : vector<1x3x256xf32>
    %cst_19 = arith.constant 2.000000e-02 : f32
    %51 = vector.broadcast %cst_19 : f32 to vector<1x3x256xf32>
    %52 = arith.addf %50, %51 : vector<1x3x256xf32>
    %cst_20 = arith.constant 6.375000e+03 : f32
    %53 = vector.broadcast %cst_20 : f32 to vector<1x3x256xf32>
    %54 = arith.mulf %52, %53 : vector<1x3x256xf32>
    %55 = math.floor %54 : vector<1x3x256xf32>
    %cst_21 = arith.constant 2.540000e+02 : f32
    %56 = vector.broadcast %cst_21 : f32 to vector<1x3x256xf32>
    %57 = arith.minimumf %55, %56 : vector<1x3x256xf32>
    %58 = vector.shape_cast %57 : vector<1x3x256xf32> to vector<3x256xf32>
    %59 = tpu.concatenate %46, %58 in 1 : vector<3x256xf32>, vector<3x256xf32> -> vector<3x512xf32>
    %c0_22 = arith.constant 0 : index
    %c0_23 = arith.constant 0 : index
    %60 = vector.load %arg3[%c0_22, %c0_23] : memref<512x32xf32, #tpu.memory_space<vmem>>, vector<512x32xf32>
    %cst_24 = arith.constant dense<0.000000e+00> : vector<3x32xf32>
    %61 = tpu.matmul %59, %60, %cst_24 {dimension_numbers = #tpu.dot_dimension_numbers<[1], [0], [0], [1], [0, 0, 1, 1], [], []>} : vector<3x512xf32>, vector<512x32xf32>, vector<3x32xf32> -> vector<3x32xf32>
    %c0_25 = arith.constant 0 : index
    %c0_26 = arith.constant 0 : index
    %62 = vector.load %arg4[%c0_25, %c0_26] : memref<1x32xf32, #tpu.memory_space<vmem>>, vector<1x32xf32>
    %63 = vector.broadcast %62 : vector<1x32xf32> to vector<3x32xf32>
    %64 = arith.addf %61, %63 : vector<3x32xf32>
    %cst_27 = arith.constant 0.000000e+00 : f32
    %65 = vector.broadcast %cst_27 : f32 to vector<3x32xf32>
    %66 = arith.maximumf %64, %65 : vector<3x32xf32>
    %67 = vector.shape_cast %66 : vector<3x32xf32> to vector<1x3x32xf32>
    %cst_28 = arith.constant dense<0.000000e+00> : vector<1x32xf32>
    %68 = vector.multi_reduction <add>, %67, %cst_28 [1] : vector<1x3x32xf32> to vector<1x32xf32>
    %cst_29 = arith.constant 0.333333343 : f32
    %69 = vector.broadcast %cst_29 : f32 to vector<1x32xf32>
    %70 = arith.mulf %68, %69 : vector<1x32xf32>
    %c0_30 = arith.constant 0 : index
    %c0_31 = arith.constant 0 : index
    %71 = vector.load %arg5[%c0_30, %c0_31] : memref<32x15xf32, #tpu.memory_space<vmem>>, vector<32x15xf32>
    %cst_32 = arith.constant dense<0.000000e+00> : vector<1x15xf32>
    %72 = tpu.matmul %70, %71, %cst_32 {dimension_numbers = #tpu.dot_dimension_numbers<[1], [0], [0], [1], [0, 0, 1, 1], [], []>} : vector<1x32xf32>, vector<32x15xf32>, vector<1x15xf32> -> vector<1x15xf32>
    %c0_33 = arith.constant 0 : index
    %c0_34 = arith.constant 0 : index
    %73 = vector.load %arg6[%c0_33, %c0_34] : memref<1x15xf32, #tpu.memory_space<vmem>>, vector<1x15xf32>
    %74 = arith.addf %72, %73 : vector<1x15xf32>
    %75 = tpu.iota {dimensions = array<i32: 1>} : vector<1x15xi32>
    %c5_i32 = arith.constant 5 : i32
    %76 = vector.broadcast %c5_i32 : i32 to vector<1x15xi32>
    %77 = arith.cmpi slt, %75, %76 : vector<1x15xi32>
    %cst_35 = arith.constant -1.000000e+30 : f32
    %78 = vector.broadcast %cst_35 : f32 to vector<1x15xf32>
    %79 = arith.select %77, %74, %78 : vector<1x15xi1>, vector<1x15xf32>
    %cst_36 = arith.constant dense<0xFF800000> : vector<1xf32>
    %80 = vector.multi_reduction <maximumf>, %79, %cst_36 [1] : vector<1x15xf32> to vector<1xf32>
    %81 = vector.shape_cast %80 : vector<1xf32> to vector<1x1xf32>
    %82 = vector.broadcast %81 : vector<1x1xf32> to vector<1x15xf32>
    %83 = arith.subf %74, %82 : vector<1x15xf32>
    %84 = math.exp %83 : vector<1x15xf32>
    %cst_37 = arith.constant 0.000000e+00 : f32
    %85 = vector.broadcast %cst_37 : f32 to vector<1x15xf32>
    %86 = arith.select %77, %84, %85 : vector<1x15xi1>, vector<1x15xf32>
    %cst_38 = arith.constant dense<0.000000e+00> : vector<1xf32>
    %87 = vector.multi_reduction <add>, %86, %cst_38 [1] : vector<1x15xf32> to vector<1xf32>
    %88 = vector.shape_cast %87 : vector<1xf32> to vector<1x1xf32>
    %89 = tpu.reciprocal %88 : vector<1x1xf32> -> vector<1x1xf32>
    %90 = vector.broadcast %89 : vector<1x1xf32> to vector<1x15xf32>
    %91 = arith.mulf %86, %90 : vector<1x15xf32>
    %cst_39 = arith.constant 0.000000e+00 : f32
    %92 = vector.broadcast %cst_39 : f32 to vector<1x15xf32>
    %93 = arith.subf %92, %74 : vector<1x15xf32>
    %94 = math.exp %93 : vector<1x15xf32>
    %cst_40 = arith.constant 1.000000e+00 : f32
    %95 = vector.broadcast %cst_40 : f32 to vector<1x15xf32>
    %96 = arith.addf %95, %94 : vector<1x15xf32>
    %97 = tpu.reciprocal %96 : vector<1x15xf32> -> vector<1x15xf32>
    %98 = arith.select %77, %91, %97 : vector<1x15xi1>, vector<1x15xf32>
    %c0_41 = arith.constant 0 : index
    %c0_42 = arith.constant 0 : index
    %c0_43 = arith.constant 0 : index
    %99 = vector.load %arg7[%c0_41, %c0_42, %c0_43] : memref<1x1x15xf32, #tpu.memory_space<vmem>>, vector<1x1x15xf32>
    %100 = vector.shape_cast %99 : vector<1x1x15xf32> to vector<1x15xf32>
    %101 = vector.shape_cast %98 : vector<1x15xf32> to vector<1x1x15xf32>
    tpu.vector_store %arg7[%c0_41, %c0_42, %c0_43], %101 {strides = array<i32>} : memref<1x1x15xf32, #tpu.memory_space<vmem>>, vector<1x1x15xf32>,
    return
  }
  func.func @transform_0(%arg0: i32) -> (i32, i32, i32, i32) {
    %c0_i32 = arith.constant 0 : i32
    %c0_i32_0 = arith.constant 0 : i32
    %c0_i32_1 = arith.constant 0 : i32
    %c0_i32_2 = arith.constant 0 : i32
    return %arg0, %c0_i32, %c0_i32_0, %c0_i32_1 : i32, i32, i32, i32
  }
  func.func @transform_1(%arg0: i32) -> (i32, i32) {
    %c0_i32 = arith.constant 0 : i32
    %c0_i32_0 = arith.constant 0 : i32
    %c0_i32_1 = arith.constant 0 : i32
    return %c0_i32, %c0_i32_0 : i32, i32
  }
  func.func @transform_2(%arg0: i32) -> (i32, i32) {
    %c0_i32 = arith.constant 0 : i32
    %c0_i32_0 = arith.constant 0 : i32
    %c0_i32_1 = arith.constant 0 : i32
    return %c0_i32, %c0_i32_0 : i32, i32
  }
  func.func @transform_3(%arg0: i32) -> (i32, i32) {
    %c0_i32 = arith.constant 0 : i32
    %c0_i32_0 = arith.constant 0 : i32
    %c0_i32_1 = arith.constant 0 : i32
    return %c0_i32, %c0_i32_0 : i32, i32
  }
  func.func @transform_4(%arg0: i32) -> (i32, i32) {
    %c0_i32 = arith.constant 0 : i32
    %c0_i32_0 = arith.constant 0 : i32
    %c0_i32_1 = arith.constant 0 : i32
    return %c0_i32, %c0_i32_0 : i32, i32
  }
  func.func @transform_5(%arg0: i32) -> (i32, i32) {
    %c0_i32 = arith.constant 0 : i32
    %c0_i32_0 = arith.constant 0 : i32
    %c0_i32_1 = arith.constant 0 : i32
    return %c0_i32, %c0_i32_0 : i32, i32
  }
  func.func @transform_6(%arg0: i32) -> (i32, i32, i32) {
    %c0_i32 = arith.constant 0 : i32
    %c0_i32_0 = arith.constant 0 : i32
    %c0_i32_1 = arith.constant 0 : i32
    return %arg0, %c0_i32, %c0_i32_0 : i32, i32, i32
  }
}

</mosaic_0001>

<llo_original>
// kernel: apn_fly_forward_test.1
$region0: #{apn_fly_forward_test.1}
  #allocation0 [shape = 'u32[]', space=smem, size = 0x4, offset = 0x4, fixed_abs, tag = 'smem constant byte address 0x4 - core index']
  #allocation1 [shape = 'u32[72,128]{1,0:T(1,128)}', space=vmem, size = 0x9000, scoped, tag = 'internal scratch']
  %s0 = inlined_call_operand.vmem [shape: bf16[2,3,4,256], index: 0, kind: input, shape index: {}]
  %s1 = inlined_call_operand.vmem [shape: f32[2,3], index: 1, kind: input, shape index: {}]
  %s2 = inlined_call_operand.vmem [shape: f32[512,32], index: 2, kind: input, shape index: {}]
  %s3 = inlined_call_operand.vmem [shape: f32[1,32], index: 3, kind: input, shape index: {}]
  %s4 = inlined_call_operand.vmem [shape: f32[32,15], index: 4, kind: input, shape index: {}]
  %s5 = inlined_call_operand.vmem [shape: f32[1,15], index: 5, kind: input, shape index: {}]
  %s6 = inlined_call_operand.vmem [shape: f32[2,1,15], index: 6, kind: output, shape index: {}]
  %s7 = sld [smem:[#allocation0]]
  $region61: #{apn_fly_forward_test.1} parent=0
    _
  %s9 = ssub.s32 1, %s7
  %s10 = scalar_select 0, %s9, %s7
  $region1: #{apn_fly_forward_test.1} parent=0
    #allocation2 [shape = 'u8[1024]{0}', space=smem, size = 0x400, scoped, tag = 'input window, operand 1, single buffered']
    #allocation3 [shape = 's32[2]{0}', space=sflag, size = 0x8, scoped, tag = 'scoped memory for apn_fly_forward_test.1']
    %11 = vsyncpa [#allocation3], 0
    loop: start=0, step=1, limit=4
    $region2: #{apn_fly_forward_test.1} parent=1 // loop_pre_header
      _
    $region3: #{apn_fly_forward_test.1} parent=1 // loop_header
      %s13 = sphi 0, %s17
      %p14 = scmp.ge.s32.totalorder %s13, 4
      %s23 = sphi 0, %s25
      %s26 = sphi 0, %s23
      %s27 = sphi 0, %s26
      %s43 = sphi 0, %s27
      %s47 = sphi 0, %s47
      %s49 = sphi 0, %s47
      %s50 = sphi 0, %s49
      %s64 = sphi 0, %s50
      %s68 = sphi 0, %s68
      %s70 = sphi 0, %s68
      %s71 = sphi 0, %s70
      %s85 = sphi 0, %s71
      %s89 = sphi 0, %s89
      %s91 = sphi 0, %s89
      %s92 = sphi 0, %s91
      %s106 = sphi 0, %s92
      %s110 = sphi 0, %s110
      %s112 = sphi 0, %s110
      %s113 = sphi 0, %s112
      %s127 = sphi 0, %s113
      %s131 = sphi 0, %s131
      %s133 = sphi 0, %s131
      %s134 = sphi 0, %s133
      %s148 = sphi 0, %s134
      %s154 = sphi 0, %s156
      %s157 = sphi 0, %s154
      %s158 = sphi 0, %s157
      %s174 = sphi 0, %s158
    $region4: #{apn_fly_forward_test.1} parent=1 // loop_header_branch
      %16 = sbr.rel (%p14) target = $region8
    $region5: #{apn_fly_forward_test.1} parent=1 // loop_body
      %s18 = ssub.s32 %s13, 1
      %s19 = ssub.s32 %s13, 2
      %s20 = sadd.s32 %s13, 1
      %s21 = ssub.s32 %s13, %s20
      %p22 = scmp.eq.s32.totalorder %s21, 0
      %s24 = sadd.s32 %s23, 1
      %s25 = scalar_select %p22, %s23, %s24
      %p28 = pneg %p22
      %p29 = scmp.eq.s32.totalorder %s13, 1
      %p30 = por %p28, %p29
      %p31 = scmp.ne.s32.totalorder %s23, %s26
      %p32 = scmp.eq.s32.totalorder %s13, 0
      %p33 = por %p31, %p32
      %p34 = scmp.ne.s32.totalorder %s23, %s26
      %p35 = scmp.eq.s32.totalorder %s18, 1
      %p36 = por %p34, %p35
      %p37 = scmp.ne.s32.totalorder %s26, %s27
      %p38 = scmp.eq.s32.totalorder %s18, 0
      %p39 = por %p37, %p38
      %p40 = scmp.ne.s32.totalorder %s26, %s27
      %p41 = scmp.eq.s32.totalorder %s19, 1
      %p42 = por %p40, %p41
      %p44 = scmp.ne.s32.totalorder %s27, %s43
      %p45 = scmp.eq.s32.totalorder %s19, 0
      %p46 = por %p44, %p45
      %s48 = sadd.s32 %s47, 1
      %p51 = scmp.eq.s32.totalorder %s13, 1
      %p52 = scmp.ne.s32.totalorder %s47, %s49
      %p53 = scmp.eq.s32.totalorder %s13, 0
      %p54 = por %p52, %p53
      %p55 = scmp.ne.s32.totalorder %s47, %s49
      %p56 = scmp.eq.s32.totalorder %s18, 1
      %p57 = por %p55, %p56
      %p58 = scmp.ne.s32.totalorder %s49, %s50
      %p59 = scmp.eq.s32.totalorder %s18, 0
      %p60 = por %p58, %p59
      %p61 = scmp.ne.s32.totalorder %s49, %s50
      %p62 = scmp.eq.s32.totalorder %s19, 1
      %p63 = por %p61, %p62
      %p65 = scmp.ne.s32.totalorder %s50, %s64
      %p66 = scmp.eq.s32.totalorder %s19, 0
      %p67 = por %p65, %p66
      %s69 = sadd.s32 %s68, 1
      %p72 = scmp.eq.s32.totalorder %s13, 1
      %p73 = scmp.ne.s32.totalorder %s68, %s70
      %p74 = scmp.eq.s32.totalorder %s13, 0
      %p75 = por %p73, %p74
      %p76 = scmp.ne.s32.totalorder %s68, %s70
      %p77 = scmp.eq.s32.totalorder %s18, 1
      %p78 = por %p76, %p77
      %p79 = scmp.ne.s32.totalorder %s70, %s71
      %p80 = scmp.eq.s32.totalorder %s18, 0
      %p81 = por %p79, %p80
      %p82 = scmp.ne.s32.totalorder %s70, %s71
      %p83 = scmp.eq.s32.totalorder %s19, 1
      %p84 = por %p82, %p83
      %p86 = scmp.ne.s32.totalorder %s71, %s85
      %p87 = scmp.eq.s32.totalorder %s19, 0
      %p88 = por %p86, %p87
      %s90 = sadd.s32 %s89, 1
      %p93 = scmp.eq.s32.totalorder %s13, 1
      %p94 = scmp.ne.s32.totalorder %s89, %s91
      %p95 = scmp.eq.s32.totalorder %s13, 0
      %p96 = por %p94, %p95
      %p97 = scmp.ne.s32.totalorder %s89, %s91
      %p98 = scmp.eq.s32.totalorder %s18, 1
      %p99 = por %p97, %p98
      %p100 = scmp.ne.s32.totalorder %s91, %s92
      %p101 = scmp.eq.s32.totalorder %s18, 0
      %p102 = por %p100, %p101
      %p103 = scmp.ne.s32.totalorder %s91, %s92
      %p104 = scmp.eq.s32.totalorder %s19, 1
      %p105 = por %p103, %p104
      %p107 = scmp.ne.s32.totalorder %s92, %s106
      %p108 = scmp.eq.s32.totalorder %s19, 0
      %p109 = por %p107, %p108
      %s111 = sadd.s32 %s110, 1
      %p114 = scmp.eq.s32.totalorder %s13, 1
      %p115 = scmp.ne.s32.totalorder %s110, %s112
      %p116 = scmp.eq.s32.totalorder %s13, 0
      %p117 = por %p115, %p116
      %p118 = scmp.ne.s32.totalorder %s110, %s112
      %p119 = scmp.eq.s32.totalorder %s18, 1
      %p120 = por %p118, %p119
      %p121 = scmp.ne.s32.totalorder %s112, %s113
      %p122 = scmp.eq.s32.totalorder %s18, 0
      %p123 = por %p121, %p122
      %p124 = scmp.ne.s32.totalorder %s112, %s113
      %p125 = scmp.eq.s32.totalorder %s19, 1
      %p126 = por %p124, %p125
      %p128 = scmp.ne.s32.totalorder %s113, %s127
      %p129 = scmp.eq.s32.totalorder %s19, 0
      %p130 = por %p128, %p129
      %s132 = sadd.s32 %s131, 1
      %p135 = scmp.eq.s32.totalorder %s13, 1
      %p136 = scmp.ne.s32.totalorder %s131, %s133
      %p137 = scmp.eq.s32.totalorder %s13, 0
      %p138 = por %p136, %p137
      %p139 = scmp.ne.s32.totalorder %s131, %s133
      %p140 = scmp.eq.s32.totalorder %s18, 1
      %p141 = por %p139, %p140
      %p142 = scmp.ne.s32.totalorder %s133, %s134
      %p143 = scmp.eq.s32.totalorder %s18, 0
      %p144 = por %p142, %p143
      %p145 = scmp.ne.s32.totalorder %s133, %s134
      %p146 = scmp.eq.s32.totalorder %s19, 1
      %p147 = por %p145, %p146
      %p149 = scmp.ne.s32.totalorder %s134, %s148
      %p150 = scmp.eq.s32.totalorder %s19, 0
      %p151 = por %p149, %p150
      %s152 = ssub.s32 %s13, %s20
      %p153 = scmp.eq.s32.totalorder %s152, 0
      %s155 = sadd.s32 %s154, 1
      %s156 = scalar_select %p153, %s154, %s155
      %p159 = pneg %p153
      %p160 = scmp.eq.s32.totalorder %s13, 1
      %p161 = por %p159, %p160
      %p162 = scmp.ne.s32.totalorder %s154, %s157
      %p163 = scmp.eq.s32.totalorder %s13, 0
      %p164 = por %p162, %p163
      %p165 = scmp.ne.s32.totalorder %s154, %s157
      %p166 = scmp.eq.s32.totalorder %s18, 1
      %p167 = por %p165, %p166
      %p168 = scmp.ne.s32.totalorder %s157, %s158
      %p169 = scmp.eq.s32.totalorder %s18, 0
      %p170 = por %p168, %p169
      %p171 = scmp.ne.s32.totalorder %s157, %s158
      %p172 = scmp.eq.s32.totalorder %s19, 1
      %p173 = por %p171, %p172
      %p175 = scmp.ne.s32.totalorder %s158, %s174
      %p176 = scmp.eq.s32.totalorder %s19, 0
      %p177 = por %p175, %p176
      %p178 = scmp.le.s32.totalorder 1, %s13
      %p179 = scmp.lt.s32.totalorder %s13, 3
      %p180 = pnand %p178, %p179
      %p181 = pneg %p180
      // Predicated region
      $region9: #{apn_fly_forward_test.1} parent=5 // pred_check
        _
      $region10: #{apn_fly_forward_test.1} parent=5 // pred_check_branch
        %183 = sbr.rel (%p180) target = $region12
      $region11: #{apn_fly_forward_test.1} parent=5 // pred_region
        %s184 = ssub.s32 %s13, 1
        // Predicated region
        $region13: #{apn_fly_forward_test.1} parent=11 // pred_check
          %p185 = pneg %p60
        $region14: #{apn_fly_forward_test.1} parent=11 // pred_check_branch
          %187 = sbr.rel (%p185) target = $region16
        $region15: #{apn_fly_forward_test.1} parent=11 // pred_region
          %189 = vsyncadd [#allocation3], 0
          %s191 = sshll.u32 %s1, 4
          %s192 = int_to_ptr.vmem [resolvable:$true] %s191
          %194 = dma.vmem_to_smem %s192, 32, [#allocation2], [#allocation3]
        $region16: #{apn_fly_forward_test.1} parent=11 // pred_fallthru
          _
        // Predicated region
        $region17: #{apn_fly_forward_test.1} parent=11 // pred_check
          %p195 = pneg %p81
        $region18: #{apn_fly_forward_test.1} parent=11 // pred_check_branch
          %197 = sbr.rel (%p195) target = $region20
        $region19: #{apn_fly_forward_test.1} parent=11 // pred_region
          _
        $region20: #{apn_fly_forward_test.1} parent=11 // pred_fallthru
          _
        // Predicated region
        $region21: #{apn_fly_forward_test.1} parent=11 // pred_check
          %p198 = pneg %p102
        $region22: #{apn_fly_forward_test.1} parent=11 // pred_check_branch
          %200 = sbr.rel (%p198) target = $region24
        $region23: #{apn_fly_forward_test.1} parent=11 // pred_region
          _
        $region24: #{apn_fly_forward_test.1} parent=11 // pred_fallthru
          _
        // Predicated region
        $region25: #{apn_fly_forward_test.1} parent=11 // pred_check
          %p201 = pneg %p123
        $region26: #{apn_fly_forward_test.1} parent=11 // pred_check_branch
          %203 = sbr.rel (%p201) target = $region28
        $region27: #{apn_fly_forward_test.1} parent=11 // pred_region
          _
        $region28: #{apn_fly_forward_test.1} parent=11 // pred_fallthru
          _
        // Predicated region
        $region29: #{apn_fly_forward_test.1} parent=11 // pred_check
          %p204 = pneg %p144
        $region30: #{apn_fly_forward_test.1} parent=11 // pred_check_branch
          %206 = sbr.rel (%p204) target = $region32
        $region31: #{apn_fly_forward_test.1} parent=11 // pred_region
          _
        $region32: #{apn_fly_forward_test.1} parent=11 // pred_fallthru
          _
      $region12: #{apn_fly_forward_test.1} parent=5 // pred_fallthru
        _
      %p207 = scmp.lt.s32.totalorder %s13, 2
      // Predicated region
      $region33: #{apn_fly_forward_test.1} parent=5 // pred_check
        %p208 = pneg %p207
      $region34: #{apn_fly_forward_test.1} parent=5 // pred_check_branch
        %210 = sbr.rel (%p208) target = $region36
      $region35: #{apn_fly_forward_test.1} parent=5 // pred_region
        // Predicated region
        $region37: #{apn_fly_forward_test.1} parent=35 // pred_check
          %p211 = pneg %p33
        $region38: #{apn_fly_forward_test.1} parent=35 // pred_check_branch
          %213 = sbr.rel (%p211) target = $region40
        $region39: #{apn_fly_forward_test.1} parent=35 // pred_region
          %p214 = scmp.lt.s32.totalorder %s13, 1
          %s215 = scalar_select %p214, %s13, 1
          %s216 = smul.addr %s215, 6
          %s217 = smul.addr %s216, 2
          %s218 = scalar_lea.vmem %s0, %s217
        $region40: #{apn_fly_forward_test.1} parent=35 // pred_fallthru
          _
      $region36: #{apn_fly_forward_test.1} parent=5 // pred_fallthru
        _
      %p219 = scmp.le.s32.totalorder 1, %s13
      %p220 = scmp.lt.s32.totalorder %s13, 3
      %p221 = pnand %p219, %p220
      %p222 = pneg %p221
      // Predicated region
      $region41: #{apn_fly_forward_test.1} parent=5 // pred_check
        _
      $region42: #{apn_fly_forward_test.1} parent=5 // pred_check_branch
        %224 = sbr.rel (%p221) target = $region44
      $region43: #{apn_fly_forward_test.1} parent=5 // pred_region
        %s225 = ssub.s32 %s13, 1
        // Predicated region
        $region45: #{apn_fly_forward_test.1} parent=43 // pred_check
          %p226 = pneg %p60
        $region46: #{apn_fly_forward_test.1} parent=43 // pred_check_branch
          %228 = sbr.rel (%p226) target = $region48
        $region47: #{apn_fly_forward_test.1} parent=43 // pred_region
          %230 = dma.done [#allocation3], 32
        $region48: #{apn_fly_forward_test.1} parent=43 // pred_fallthru
          _
        %231 = sfence
        %p232 = scmp.lt.s32.totalorder %s18, 1
        %s233 = scalar_select %p232, %s18, 1
        %s234 = smul.addr %s233, 6
        %s235 = smul.addr %s234, 2
        %s236 = scalar_lea.vmem %s0, %s235
        %p237 = pneg %p39
        %p238 = pneg %p36
        %p239 = pneg %p60
        %p240 = pneg %p57
        %p241 = pneg %p81
        %p242 = pneg %p78
        %p243 = pneg %p102
        %p244 = pneg %p99
        %p245 = pneg %p123
        %p246 = pneg %p120
        %p247 = pneg %p144
        %p248 = pneg %p141
        %p249 = pneg %p170
        %p250 = pneg %p167
        %p251 = scmp.lt.s32.totalorder %s18, 1
        %s252 = scalar_select %p251, %s18, 1
        %s253 = scalar_lea.vmem %s6, %s252
        %p254 = scmp.lt.s32.totalorder %s18, 1
        %s255 = scalar_select %p254, %s18, 1
        %s256 = smul.addr %s255, 6
        %s257 = smul.addr %s256, 2
        %s258 = scalar_lea.vmem %s0, %s257
        %p259 = scmp.lt.s32.totalorder %s18, 1
        %s260 = scalar_select %p259, %s18, 1
        %s261 = scalar_lea.vmem %s6, %s260
        %v262 = vld [vmem:[%s258] sm:$0xf]
        %v263 = vld [vmem:[%s258 + $0x4] sm:$0xf]
        %v264 = vld [vmem:[%s258 + $0x8] sm:$0xf]
        %v265 = vunpack.c.l.bf16 %v262
        %v266 = vunpack.c.l.bf16 %v263
        %v267 = vunpack.c.l.bf16 %v264
        %v271 = vrot.slane %v265, 7
        %v272 = vrot.slane %v266, 7
        %v273 = vrot.slane %v267, 7
        %v277 = vsub.f32 %v265, %v271
        %v278 = vsub.f32 %v266, %v272
        %v279 = vsub.f32 %v267, %v273
        %s280 = sld [smem:[#allocation2]]
        %v281 = vstv %s280
        %v282 = vmul.f32 %v281, %v277
        %s283 = sld [smem:[#allocation2 + $0x80]]
        %v284 = vstv %s283
        %v285 = vmul.f32 %v284, %v277
        %s286 = sld [smem:[#allocation2 + $0x1]]
        %v287 = vstv %s286
        %v288 = vmul.f32 %v287, %v278
        %v289 = vadd.f32 %v282, %v288
        %s290 = sld [smem:[#allocation2 + $0x81]]
        %v291 = vstv %s290
        %v292 = vmul.f32 %v291, %v278
        %v293 = vadd.f32 %v285, %v292
        %s294 = sld [smem:[#allocation2 + $0x2]]
        %v295 = vstv %s294
        %v296 = vmul.f32 %v295, %v279
        %v297 = vadd.f32 %v289, %v296
        %s298 = sld [smem:[#allocation2 + $0x82]]
        %v299 = vstv %s298
        %v300 = vmul.f32 %v299, %v279
        %v301 = vadd.f32 %v293, %v300
        %v302 = vmax.f32 %v297, -0.02
        %v303 = vmin.f32 %v302, 0.02
        %v304 = vadd.f32 %v303, 0.02
        %v305 = vmul.f32 %v304, 6375.0
        %v306 = vfloor.f32 %v305
        %v307 = vmin.f32 %v306, 254.0
        %v308 = vmax.f32 %v301, -0.02
        %v309 = vmin.f32 %v308, 0.02
        %v310 = vadd.f32 %v309, 0.02
        %v311 = vmul.f32 %v310, 6375.0
        %v312 = vfloor.f32 %v311
        %v313 = vmin.f32 %v312, 254.0
        %315 = vst [vmem:[#allocation1] ss:$2 sm:$0xff] %v307
        %v316 = vld.sshfl [vmem:[#allocation1] sm:$0xff pattern:$0x75316420]
        %v317 = vld.sshfl [vmem:[#allocation1 + $0x8] sm:$0xff pattern:$0x75316420]
        %319 = vst [vmem:[#allocation1] ss:$2 sm:$0xff] %v313
        %v320 = vld.sshfl [vmem:[#allocation1] sm:$0xff pattern:$0x75316420]
        %v321 = vld.sshfl [vmem:[#allocation1 + $0x8] sm:$0xff pattern:$0x75316420]
        %v322 = vld [vmem:[%s2] sm:$0xff]
        %v323 = vld [vmem:[%s2 + $0x8] sm:$0xff]
        %v324 = vld [vmem:[%s2 + $0x10] sm:$0xff]
        %v325 = vld [vmem:[%s2 + $0x18] sm:$0xff]
        %v326 = vld [vmem:[%s2 + $0x20] sm:$0xff]
        %v327 = vld [vmem:[%s2 + $0x28] sm:$0xff]
        %v328 = vld [vmem:[%s2 + $0x30] sm:$0xff]
        %v329 = vld [vmem:[%s2 + $0x38] sm:$0xff]
        %v330 = vld [vmem:[%s2 + $0x40] sm:$0xff]
        %v331 = vld [vmem:[%s2 + $0x48] sm:$0xff]
        %v332 = vld [vmem:[%s2 + $0x50] sm:$0xff]
        %v333 = vld [vmem:[%s2 + $0x58] sm:$0xff]
        %v334 = vld [vmem:[%s2 + $0x60] sm:$0xff]
        %v335 = vld [vmem:[%s2 + $0x68] sm:$0xff]
        %v336 = vld [vmem:[%s2 + $0x70] sm:$0xff]
        %v337 = vld [vmem:[%s2 + $0x78] sm:$0xff]
        %v338 = vld [vmem:[%s2 + $0x80] sm:$0xff]
        %v339 = vld [vmem:[%s2 + $0x88] sm:$0xff]
        %v340 = vld [vmem:[%s2 + $0x90] sm:$0xff]
        %v341 = vld [vmem:[%s2 + $0x98] sm:$0xff]
        %v342 = vld [vmem:[%s2 + $0xa0] sm:$0xff]
        %v343 = vld [vmem:[%s2 + $0xa8] sm:$0xff]
        %v344 = vld [vmem:[%s2 + $0xb0] sm:$0xff]
        %v345 = vld [vmem:[%s2 + $0xb8] sm:$0xff]
        %v346 = vld [vmem:[%s2 + $0xc0] sm:$0xff]
        %v347 = vld [vmem:[%s2 + $0xc8] sm:$0xff]
        %v348 = vld [vmem:[%s2 + $0xd0] sm:$0xff]
        %v349 = vld [vmem:[%s2 + $0xd8] sm:$0xff]
        %v350 = vld [vmem:[%s2 + $0xe0] sm:$0xff]
        %v351 = vld [vmem:[%s2 + $0xe8] sm:$0xff]
        %v352 = vld [vmem:[%s2 + $0xf0] sm:$0xff]
        %v353 = vld [vmem:[%s2 + $0xf8] sm:$0xff]
        %v354 = vld [vmem:[%s2 + $0x100] sm:$0xff]
        %v355 = vld [vmem:[%s2 + $0x108] sm:$0xff]
        %v356 = vld [vmem:[%s2 + $0x110] sm:$0xff]
        %v357 = vld [vmem:[%s2 + $0x118] sm:$0xff]
        %v358 = vld [vmem:[%s2 + $0x120] sm:$0xff]
        %v359 = vld [vmem:[%s2 + $0x128] sm:$0xff]
        %v360 = vld [vmem:[%s2 + $0x130] sm:$0xff]
        %v361 = vld [vmem:[%s2 + $0x138] sm:$0xff]
        %v362 = vld [vmem:[%s2 + $0x140] sm:$0xff]
        %v363 = vld [vmem:[%s2 + $0x148] sm:$0xff]
        %v364 = vld [vmem:[%s2 + $0x150] sm:$0xff]
        %v365 = vld [vmem:[%s2 + $0x158] sm:$0xff]
        %v366 = vld [vmem:[%s2 + $0x160] sm:$0xff]
        %v367 = vld [vmem:[%s2 + $0x168] sm:$0xff]
        %v368 = vld [vmem:[%s2 + $0x170] sm:$0xff]
        %v369 = vld [vmem:[%s2 + $0x178] sm:$0xff]
        %v370 = vld [vmem:[%s2 + $0x180] sm:$0xff]
        %v371 = vld [vmem:[%s2 + $0x188] sm:$0xff]
        %v372 = vld [vmem:[%s2 + $0x190] sm:$0xff]
        %v373 = vld [vmem:[%s2 + $0x198] sm:$0xff]
        %v374 = vld [vmem:[%s2 + $0x1a0] sm:$0xff]
        %v375 = vld [vmem:[%s2 + $0x1a8] sm:$0xff]
        %v376 = vld [vmem:[%s2 + $0x1b0] sm:$0xff]
        %v377 = vld [vmem:[%s2 + $0x1b8] sm:$0xff]
        %v378 = vld [vmem:[%s2 + $0x1c0] sm:$0xff]
        %v379 = vld [vmem:[%s2 + $0x1c8] sm:$0xff]
        %v380 = vld [vmem:[%s2 + $0x1d0] sm:$0xff]
        %v381 = vld [vmem:[%s2 + $0x1d8] sm:$0xff]
        %v382 = vld [vmem:[%s2 + $0x1e0] sm:$0xff]
        %v383 = vld [vmem:[%s2 + $0x1e8] sm:$0xff]
        %v384 = vld [vmem:[%s2 + $0x1f0] sm:$0xff]
        %v385 = vld [vmem:[%s2 + $0x1f8] sm:$0xff]
        %v386 = vld [vmem:[%s3] sm:$0x1]
        %v388 = vperm.slane %v386, 0
        %v390 = vrot.slane %v316, 1
        %v391 = vrot.slane %v317, 1
        %v392 = vrot.slane %v320, 1
        %v393 = vrot.slane %v321, 1
        %398 = vmatpush.msra.mxu0 %v337
        %399 = vmatpush.msra.mxu0 %v336
        %400 = vmatpush.msra.mxu0 %v335
        %401 = vmatpush.msra.mxu0 %v334
        %402 = vmatpush.msra.mxu0 %v333
        %403 = vmatpush.msra.mxu0 %v332
        %404 = vmatpush.msra.mxu0 %v331
        %405 = vmatpush.msra.mxu0 %v330
        %406 = vmatpush.msra.mxu0 %v329
        %407 = vmatpush.msra.mxu0 %v328
        %408 = vmatpush.msra.mxu0 %v327
        %409 = vmatpush.msra.mxu0 %v326
        %410 = vmatpush.msra.mxu0 %v325
        %411 = vmatpush.msra.mxu0 %v324
        %412 = vmatpush.msra.mxu0 %v323
        %413 = vmatpush.msra.mxu0 %v322
        %414 = vmatmul.f32.gmra.mxu0 %v390
        %v415 = vpop.f32.mrf.mxu0
        %v416 = vadd.f32 %v388, %v415
        %417 = vdwg.mxu0
        %418 = vmatpush.msra.mxu0 %v353
        %419 = vmatpush.msra.mxu0 %v352
        %420 = vmatpush.msra.mxu0 %v351
        %421 = vmatpush.msra.mxu0 %v350
        %422 = vmatpush.msra.mxu0 %v349
        %423 = vmatpush.msra.mxu0 %v348
        %424 = vmatpush.msra.mxu0 %v347
        %425 = vmatpush.msra.mxu0 %v346
        %426 = vmatpush.msra.mxu0 %v345
        %427 = vmatpush.msra.mxu0 %v344
        %428 = vmatpush.msra.mxu0 %v343
        %429 = vmatpush.msra.mxu0 %v342
        %430 = vmatpush.msra.mxu0 %v341
        %431 = vmatpush.msra.mxu0 %v340
        %432 = vmatpush.msra.mxu0 %v339
        %433 = vmatpush.msra.mxu0 %v338
        %434 = vmatmul.f32.gmra.mxu0 %v391
        %v435 = vpop.f32.mrf.mxu0
        %v436 = vadd.f32 %v416, %v435
        %437 = vdwg.mxu0
        %438 = vmatpush.msra.mxu0 %v369
        %439 = vmatpush.msra.mxu0 %v368
        %440 = vmatpush.msra.mxu0 %v367
        %441 = vmatpush.msra.mxu0 %v366
        %442 = vmatpush.msra.mxu0 %v365
        %443 = vmatpush.msra.mxu0 %v364
        %444 = vmatpush.msra.mxu0 %v363
        %445 = vmatpush.msra.mxu0 %v362
        %446 = vmatpush.msra.mxu0 %v361
        %447 = vmatpush.msra.mxu0 %v360
        %448 = vmatpush.msra.mxu0 %v359
        %449 = vmatpush.msra.mxu0 %v358
        %450 = vmatpush.msra.mxu0 %v357
        %451 = vmatpush.msra.mxu0 %v356
        %452 = vmatpush.msra.mxu0 %v355
        %453 = vmatpush.msra.mxu0 %v354
        %454 = vmatmul.f32.gmra.mxu0 %v392
        %v455 = vpop.f32.mrf.mxu0
        %v456 = vadd.f32 %v436, %v455
        %457 = vdwg.mxu0
        %458 = vmatpush.msra.mxu0 %v385
        %459 = vmatpush.msra.mxu0 %v384
        %460 = vmatpush.msra.mxu0 %v383
        %461 = vmatpush.msra.mxu0 %v382
        %462 = vmatpush.msra.mxu0 %v381
        %463 = vmatpush.msra.mxu0 %v380
        %464 = vmatpush.msra.mxu0 %v379
        %465 = vmatpush.msra.mxu0 %v378
        %466 = vmatpush.msra.mxu0 %v377
        %467 = vmatpush.msra.mxu0 %v376
        %468 = vmatpush.msra.mxu0 %v375
        %469 = vmatpush.msra.mxu0 %v374
        %470 = vmatpush.msra.mxu0 %v373
        %471 = vmatpush.msra.mxu0 %v372
        %472 = vmatpush.msra.mxu0 %v371
        %473 = vmatpush.msra.mxu0 %v370
        %474 = vmatmul.f32.gmra.mxu0 %v393
        %v475 = vpop.f32.mrf.mxu0
        %v476 = vadd.f32 %v456, %v475
        %477 = vdwg.mxu0
        %v478 = vmax.f32 %v476, 0.0
        %vm479 = vcmask 256000
        %v480 = vsel %vm479, %v478, 0.0
        %v481 = vrot.slane %v480, 4
        %v482 = vadd.f32 %v480, %v481
        %v483 = vrot.slane %v482, 2
        %v484 = vadd.f32 %v482, %v483
        %v485 = vrot.slane %v484, 1
        %v486 = vadd.f32 %v484, %v485
        %v487 = vmul.f32 %v486, 0.33333334
        %v488 = vld [vmem:[%s4] sm:$0xff]
        %v489 = vld [vmem:[%s4 + $0x8] sm:$0xff]
        %v490 = vld [vmem:[%s4 + $0x10] sm:$0xff]
        %v491 = vld [vmem:[%s4 + $0x18] sm:$0xff]
        %v492 = vld [vmem:[%s5] sm:$0x1]
        %vm493 = vcmask 261120
        %v495 = vsel %vm493, %v487, 0
        %497 = vmatpush.msra.mxu0 0.0
        %498 = vmatpush.msra.mxu0 0.0
        %499 = vmatpush.msra.mxu0 0.0
        %500 = vmatpush.msra.mxu0 0.0
        %501 = vmatpush.msra.mxu0 0.0
        %502 = vmatpush.msra.mxu0 0.0
        %503 = vmatpush.msra.mxu0 0.0
        %504 = vmatpush.msra.mxu0 0.0
        %505 = vmatpush.msra.mxu0 0.0
        %506 = vmatpush.msra.mxu0 0.0
        %507 = vmatpush.msra.mxu0 0.0
        %508 = vmatpush.msra.mxu0 0.0
        %509 = vmatpush.msra.mxu0 %v491
        %510 = vmatpush.msra.mxu0 %v490
        %511 = vmatpush.msra.mxu0 %v489
        %512 = vmatpush.msra.mxu0 %v488
        %513 = vmatmul.f32.gmra.mxu0 %v495
        %v514 = vpop.f32.mrf.mxu0
        %v515 = vadd.f32 %v492, %v514
        %516 = vdwg.mxu0
        %v517 = vlaneseq
        %v518 = vand.u32 %v517, 127
        %vm519 = vcmp.lt.s32.totalorder %v518, 5
        %v520 = vsel %vm519, %v515, -1e+30
        %vm521 = vcmask 114688
        %v522 = vsel %vm521, %v520, -inf
        %523 = vmax.xlane.f32.xlu0 %v522
        %v524 = vpop.xlane.xlu0 %523
        %v525 = vsub.f32 %v515, %v524
        %v526 = vmul.f32 %v525, 1.442695
        %v527 = vpow.pop %v526
        %v528 = vsel %vm519, %v527, 0.0
        %v529 = vsel %vm521, %v528, 0.0
        %530 = vadd.xlane.f32.xlu0 %v529
        %v531 = vpop.xlane.xlu0 %530
        %v532 = vrcp.pop %v531
        %v533 = vmul.f32 %v531, %v532
        %v534 = vsub.f32 1.0, %v533
        %v535 = vmul.f32 %v532, %v534
        %v536 = vadd.f32 %v532, %v535
        %vm537 = vweird.f32 %v531
        %vm538 = vweird.f32 %v532
        %vm539 = vmor %vm537, %vm538
        %v540 = vsel %vm539, %v532, %v536
        %v541 = vand.u32 2147483647, %v531
        %vm542 = vcmp.eq.f32.partialorder %v541, 8.507059e+37
        %v543 = vand.u32 %v531, 2147483648
        %v544 = vor.u32 1.1754944e-38, %v543
        %v545 = vsel %vm542, %v544, %v540
        %v546 = vmul.f32 %v528, %v545
        %v547 = vsub.f32 0.0, %v515
        %v548 = vmul.f32 %v547, 1.442695
        %v549 = vpow.pop %v548
        %v550 = vadd.f32 %v549, 1.0
        %v551 = vrcp.pop %v550
        %v552 = vmul.f32 %v550, %v551
        %v553 = vsub.f32 1.0, %v552
        %v554 = vmul.f32 %v551, %v553
        %v555 = vadd.f32 %v551, %v554
        %vm556 = vweird.f32 %v550
        %vm557 = vweird.f32 %v551
        %vm558 = vmor %vm556, %vm557
        %v559 = vsel %vm558, %v551, %v555
        %v560 = vand.u32 2147483647, %v550
        %vm561 = vcmp.eq.f32.partialorder %v560, 8.507059e+37
        %v562 = vand.u32 %v550, 2147483648
        %v563 = vor.u32 1.1754944e-38, %v562
        %v564 = vsel %vm561, %v563, %v559
        %v565 = vsel %vm519, %v546, %v564
        %566 = vst.msk [vmem:[%s261] sm:$0x1] %vm521, %v565
        %p567 = scmp.lt.s32.totalorder %s18, 1
        %s568 = scalar_select %p567, %s18, 1
        %s569 = scalar_lea.vmem %s6, %s568
        // Predicated region
        $region49: #{apn_fly_forward_test.1} parent=43 // pred_check
          %p570 = pneg %p167
        $region50: #{apn_fly_forward_test.1} parent=43 // pred_check_branch
          %572 = sbr.rel (%p570) target = $region52
        $region51: #{apn_fly_forward_test.1} parent=43 // pred_region
          _
        $region52: #{apn_fly_forward_test.1} parent=43 // pred_fallthru
          _
      $region44: #{apn_fly_forward_test.1} parent=5 // pred_fallthru
        _
      %p573 = scmp.le.s32.totalorder 2, %s13
      // Predicated region
      $region53: #{apn_fly_forward_test.1} parent=5 // pred_check
        %p574 = pneg %p573
      $region54: #{apn_fly_forward_test.1} parent=5 // pred_check_branch
        %576 = sbr.rel (%p574) target = $region56
      $region55: #{apn_fly_forward_test.1} parent=5 // pred_region
        %s577 = ssub.s32 %s13, 2
        // Predicated region
        $region57: #{apn_fly_forward_test.1} parent=55 // pred_check
          %p578 = pneg %p173
        $region58: #{apn_fly_forward_test.1} parent=55 // pred_check_branch
          %580 = sbr.rel (%p578) target = $region60
        $region59: #{apn_fly_forward_test.1} parent=55 // pred_region
          %p581 = scmp.lt.s32.totalorder %s19, 1
          %s582 = scalar_select %p581, %s19, 1
          %s583 = scalar_lea.vmem %s6, %s582
        $region60: #{apn_fly_forward_test.1} parent=55 // pred_fallthru
          _
      $region56: #{apn_fly_forward_test.1} parent=5 // pred_fallthru
        _
    $region6: #{apn_fly_forward_test.1} parent=1 // loop_footer
      %s17 = sadd.s32 1, %s13
    $region7: #{apn_fly_forward_test.1} parent=1 // loop_footer_branch
      %12 = sbr.rel target = $region3
    $region8: #{apn_fly_forward_test.1} parent=1 // loop_exit
      _
    %584 = vsyncpa [#allocation3], 1
    %s585 = scalar_lea.sflag [#allocation3], 1
    %586 = vsyncpa %s585, 1

</llo_original>
